<compile_context>
chip_gen: v6e
topology: v6e:2x2x1
jax: 0.10.0
libtpu: 0.0.40
codegen_flags: <defaults>
</compile_context>

<pallas_src>
import functools

import jax
import jax.numpy as jnp
from jax.experimental import pallas as pl
from jax.experimental.pallas import tpu as pltpu

_MIB = 1024 * 1024
_TARGET_TILE_BYTES = 4 * _MIB


def _round_up(n, m):
    return (n + m - 1) // m * m


def _sublane(dtype):
    return {4: 8, 2: 16, 1: 32}.get(jnp.dtype(dtype).itemsize, 8)


def _padded_vmem_bytes(shape, dtype):
    """Bytes one VMEM buffer of `shape` occupies after (sublane, 128) tiling."""
    isz = jnp.dtype(dtype).itemsize
    sub = _sublane(dtype)
    if len(shape) == 1:
        return _round_up(int(shape[0]), 128) * isz * 8
    lead = 1
    for d in shape[:-2]:
        lead *= int(d)
    return lead * _round_up(int(shape[-2]), sub) * _round_up(int(shape[-1]), 128) * isz


def _vmem_capacity_bytes():
    try:
        cap = int(pltpu.get_tpu_info().vmem_capacity_bytes)
        if cap > 0:
            return cap
    except Exception:
        pass
    return 64 * _MIB  # conservative: valid on every generation (v7x = 64 MiB / TC)


def _vmem_limit(need_bytes, cap):
    lim = max(32 * _MIB, need_bytes + need_bytes // 4 + _MIB)
    return int(min(cap - 2 * _MIB, lim))


def _choose_bt(B, slab_bytes, budget, param_bytes):
    """Batch tile: ~4 MiB tiles, >=4 grid steps when possible, even grid length."""
    avail = max(4 * slab_bytes, budget - 2 * param_bytes)
    max_bt = max(1, avail // (4 * slab_bytes))          # in+out, double-buffered
    target_bt = max(1, _TARGET_TILE_BYTES // slab_bytes)
    bt = int(max(1, min(B, max_bt, target_bt)))
    if B >= 4:
        bt = min(bt, max(1, B // 4))                    # keep >= 4 pipeline stages
    # prefer an even number of grid steps (v7x: 2 TensorCores share the grid)
    while bt > 1 and (-(-B // bt)) % 2 == 1:
        bt -= 1
    return bt


def _choose_lt(L, bytes_per_lane, budget, n_bufs, extra_bytes):
    """L tile for the split path: >=512 lanes / ~4 MiB when the budget allows."""
    avail = max(n_bufs * 128 * bytes_per_lane, budget - extra_bytes)
    max_lt = avail // (n_bufs * bytes_per_lane)
    target_lt = max(512, _TARGET_TILE_BYTES // bytes_per_lane)
    lt = int(min(max_lt, target_lt))
    lt = max(128, (lt // 128) * 128)
    return min(lt, _round_up(L, 128))


def _gate(y, w1t, b1, w2t, b2):
    """Gate MLP on (bt, C): 1x1 conv + Mish, 1x1 conv + HardSigmoid (f32 math)."""
    z = jnp.dot(y.astype(w1t.dtype), w1t, preferred_element_type=jnp.float32) + b1
    z = z * jnp.tanh(jnp.logaddexp(0.0, z))                               # Mish
    g = jnp.dot(z.astype(w2t.dtype), w2t, preferred_element_type=jnp.float32) + b2
    return jnp.clip(g + 3.0, 0.0, 6.0) * (1.0 / 6.0)                      # HardSigmoid


def _se_fused_kernel(x_ref, w1t_ref, b1_ref, w2t_ref, b2_ref, o_ref, *, inv_len):
    # Squeeze: mean over L, accumulated in f32 (block spans the full, unpadded L).
    y = jnp.sum(x_ref[...], axis=-1, dtype=jnp.float32) * inv_len          # (bt, C)
    s = _gate(y, w1t_ref[...], b1_ref[...], w2t_ref[...], b2_ref[...])     # (bt, C)
    # Excite: re-index x from VMEM (hidden under the HBM DMA) rather than keeping
    # the whole (bt, C, L) slab live in vregs across the gate.
    o_ref[...] = x_ref[...] * s.astype(o_ref.dtype)[:, :, None]


def _se_sum_kernel(x_ref, o_ref, *, lt, length, need_mask):
    l = pl.program_id(1)

    @pl.when(l == 0)
    def _init():
        o_ref[...] = jnp.zeros_like(o_ref)

    x = x_ref[...]                                                         # (1, C, lt)
    if need_mask:
        lane = jax.lax.broadcasted_iota(jnp.int32, x.shape, 2) + l * lt
        x = jnp.where(lane < length, x, jnp.zeros((), x.dtype))
    o_ref[...] += jnp.sum(x, axis=-1, dtype=jnp.float32)[:, None, :]       # (1, 1, C)


def _se_scale_kernel(x_ref, s_ref, o_ref):
    x = x_ref[...]                                                         # (1, C, lt)
    s = s_ref[...][0].astype(x.dtype)                                      # (1, C)
    o_ref[...] = x * s[:, :, None]


def squeeze_and_excite(x, w1, b1, w2, b2, *, vmem_budget_bytes=None):
    """SE block forward.

    x : (B, C, L)          input, any float dtype.
    w1: (Cs, C)            se_reduce 1x1 conv weight (kernel dim squeezed).
    b1: (Cs,) or (Cs, 1)   se_reduce bias.
    w2: (C, Cs)            se_expand 1x1 conv weight.
    b2: (C,) or (C, 1)     se_expand bias.
    """
    B, C, L = x.shape
    Cs = w1.shape[0]
    dtype = x.dtype
    isz = jnp.dtype(dtype).itemsize
    inv_len = 1.0 / float(L)

    cap = _vmem_capacity_bytes()
    budget = (cap * 3) // 4 if vmem_budget_bytes is None else int(vmem_budget_bytes)

    # Gate parameters: pre-transposed (no in-kernel transpose), squeeze dim padded
    # to a lane multiple (zero rows/cols contribute exactly 0 through Mish),
    # biases lane-major f32.  bf16 inputs use bf16 weights (halves their VMEM on
    # v7x; gate FLOPs are negligible and accumulation stays f32).
    wdtype = jnp.bfloat16 if dtype == jnp.bfloat16 else jnp.float32
    Cs_p = _round_up(Cs, 128)
    w1t = jnp.zeros((C, Cs_p), wdtype).at[:, :Cs].set(jnp.asarray(w1, wdtype).T)
    b1r = jnp.zeros((1, Cs_p), jnp.float32).at[0, :Cs].set(
        jnp.asarray(b1, jnp.float32).reshape(-1))
    w2t = jnp.zeros((Cs_p, C), wdtype).at[:Cs, :].set(jnp.asarray(w2, wdtype).T)
    b2r = jnp.asarray(b2, jnp.float32).reshape(1, C)

    param_bytes = (_padded_vmem_bytes((C, Cs_p), wdtype)
                   + _padded_vmem_bytes((1, Cs_p), jnp.float32)
                   + _padded_vmem_bytes((Cs_p, C), wdtype)
                   + _padded_vmem_bytes((1, C), jnp.float32))
    slab_bytes = _padded_vmem_bytes((C, L), dtype)   # one example's (C, L) VMEM tile

    flops = int(2 * B * C * L + 4 * B * C * Cs + 10 * B * Cs)
    transc = int(3 * B * Cs)

    if 4 * slab_bytes + 2 * param_bytes <= budget:
        # ---- fused single pass: grid over batch tiles, x read exactly once ----
        bt = _choose_bt(B, slab_bytes, budget, param_bytes)
        nb = -(-B // bt)
        need = 4 * bt * slab_bytes + 2 * param_bytes
        out = pl.pallas_call(
            functools.partial(_se_fused_kernel, inv_len=inv_len),
            out_shape=jax.ShapeDtypeStruct((B, C, L), dtype),
            grid_spec=pltpu.PrefetchScalarGridSpec(
                num_scalar_prefetch=0,
                grid=(nb,),
                in_specs=[
                    pl.BlockSpec((bt, C, L), lambda b: (b, 0, 0)),
                    pl.BlockSpec((C, Cs_p), lambda b: (0, 0)),
                    pl.BlockSpec((1, Cs_p), lambda b: (0, 0)),
                    pl.BlockSpec((Cs_p, C), lambda b: (0, 0)),
                    pl.BlockSpec((1, C), lambda b: (0, 0)),
                ],
                out_specs=pl.BlockSpec((bt, C, L), lambda b: (b, 0, 0)),
            ),
            compiler_params=pltpu.CompilerParams(
                dimension_semantics=("parallel",),
                vmem_limit_bytes=_vmem_limit(need, cap),
            ),
            cost_estimate=pl.CostEstimate(
                flops=flops, transcendentals=transc,
                bytes_accessed=int(2 * B * C * L * isz)),
        )(x, w1t, b1r, w2t, b2r)
        return out

    # ---- split fallback: slab too big for VMEM (mainly v7x 64 MiB) -----------
    # 1) L-tiled masked sum -> f32 channel sums (B, 1, C)
    # 2) tiny batched gate MLP in plain XLA (off the streaming DMA loop)
    # 3) L-tiled streaming scale (reads x a second time from HBM)
    bytes_per_lane = _round_up(C, _sublane(dtype)) * isz
    s_bytes = _padded_vmem_bytes((1, 1, C), jnp.float32)

    lt_sum = _choose_lt(L, bytes_per_lane, budget, n_bufs=2, extra_bytes=2 * s_bytes)
    nl_sum = -(-L // lt_sum)
    sums = pl.pallas_call(
        functools.partial(_se_sum_kernel, lt=lt_sum, length=L,
                          need_mask=bool(L % lt_sum)),
        out_shape=jax.ShapeDtypeStruct((B, 1, C), jnp.float32),
        grid_spec=pltpu.PrefetchScalarGridSpec(
            num_scalar_prefetch=0,
            grid=(B, nl_sum),
            in_specs=[pl.BlockSpec((1, C, lt_sum), lambda b, l: (b, 0, l))],
            out_specs=pl.BlockSpec((1, 1, C), lambda b, l: (b, 0, 0)),
        ),
        compiler_params=pltpu.CompilerParams(
            dimension_semantics=("parallel", "arbitrary"),
            vmem_limit_bytes=_vmem_limit(2 * bytes_per_lane * lt_sum + 2 * s_bytes, cap),
        ),
        cost_estimate=pl.CostEstimate(
            flops=int(B * C * L), transcendentals=0,
            bytes_accessed=int(B * C * L * isz)),
    )(x)

    y = sums[:, 0, :] * inv_len                                            # (B, C) f32
    w1f = jnp.asarray(w1, jnp.float32)
    w2f = jnp.asarray(w2, jnp.float32)
    z = y @ w1f.T + jnp.asarray(b1, jnp.float32).reshape(-1)[None, :]      # (B, Cs)
    z = z * jnp.tanh(jnp.logaddexp(0.0, z))                                # Mish
    g = z @ w2f.T + jnp.asarray(b2, jnp.float32).reshape(-1)[None, :]      # (B, C)
    s = (jnp.clip(g + 3.0, 0.0, 6.0) * (1.0 / 6.0))[:, None, :]            # (B, 1, C)

    lt_sc = _choose_lt(L, bytes_per_lane, budget, n_bufs=4, extra_bytes=2 * s_bytes)
    nl_sc = -(-L // lt_sc)
    out = pl.pallas_call(
        _se_scale_kernel,
        out_shape=jax.ShapeDtypeStruct((B, C, L), dtype),
        grid_spec=pltpu.PrefetchScalarGridSpec(
            num_scalar_prefetch=0,
            grid=(B, nl_sc),
            in_specs=[
                pl.BlockSpec((1, C, lt_sc), lambda b, l: (b, 0, l)),
                pl.BlockSpec((1, 1, C), lambda b, l: (b, 0, 0)),
            ],
            out_specs=pl.BlockSpec((1, C, lt_sc), lambda b, l: (b, 0, l)),
        ),
        compiler_params=pltpu.CompilerParams(
            dimension_semantics=("parallel", "parallel"),
            vmem_limit_bytes=_vmem_limit(4 * bytes_per_lane * lt_sc + 2 * s_bytes, cap),
        ),
        cost_estimate=pl.CostEstimate(
            flops=int(B * C * L), transcendentals=0,
            bytes_accessed=int(2 * B * C * L * isz)),
    )(x, s)
    return out


def _reference(x, w1, b1, w2, b2):
    y = jnp.mean(x, axis=2, keepdims=True)                        # (B, C, 1)
    y = jnp.einsum("oc,bcl->bol", w1, y) + b1[None, :, None]      # (B, Cs, 1)
    y = y * jnp.tanh(jnp.logaddexp(0.0, y))                       # Mish
    y = jnp.einsum("oc,bcl->bol", w2, y) + b2[None, :, None]      # (B, C, 1)
    y = jnp.clip(y + 3.0, 0.0, 6.0) / 6.0                         # HardSigmoid
    return x * y


if __name__ == "__main__":
    key = jax.random.PRNGKey(0)
    kx, kw1, kb1, kw2, kb2, kx2, kx3 = jax.random.split(key, 7)

    # Test 1: module-consistent small shapes -> fused single-kernel path.
    B, C, L = 2, 4, 16
    Cs = int(C * 0.5)   # se_ratio = 0.5
    x = jax.random.normal(kx, (B, C, L), dtype=jnp.float32)
    w1 = jax.random.normal(kw1, (Cs, C), dtype=jnp.float32) * 0.5
    b1 = jax.random.normal(kb1, (Cs,), dtype=jnp.float32) * 0.1
    w2 = jax.random.normal(kw2, (C, Cs), dtype=jnp.float32) * 0.5
    b2 = jax.random.normal(kb2, (C,), dtype=jnp.float32) * 0.1

    out = jax.block_until_ready(squeeze_and_excite(x, w1, b1, w2, b2))
    ref = _reference(x, w1, b1, w2, b2)
    assert out.shape == (B, C, L)
    assert jnp.allclose(out, ref, atol=1e-5, rtol=1e-5), "fused path mismatch"

    # Test 2: unaligned shapes (C % 8 != 0, L % 128 != 0, batch tile doesn't
    # divide B) -> exercises the no-pad full-extent blocks + partial batch tile.
    B3, C3, L3 = 3, 6, 100
    Cs3 = int(C3 * 0.5)
    x3 = jax.random.normal(kx3, (B3, C3, L3), dtype=jnp.float32)
    w1c = jax.random.normal(kw1, (Cs3, C3), dtype=jnp.float32) * 0.5
    b1c = jax.random.normal(kb1, (Cs3,), dtype=jnp.float32) * 0.1
    w2c = jax.random.normal(kw2, (C3, Cs3), dtype=jnp.float32) * 0.5
    b2c = jax.random.normal(kb2, (C3,), dtype=jnp.float32) * 0.1

    out3 = jax.block_until_ready(squeeze_and_excite(x3, w1c, b1c, w2c, b2c))
    ref3 = _reference(x3, w1c, b1c, w2c, b2c)
    assert out3.shape == (B3, C3, L3)
    assert jnp.allclose(out3, ref3, atol=1e-5, rtol=1e-5), "unaligned path mismatch"

    # Test 3: force the split (masked-sum -> XLA gate -> scale) fallback used
    # when a full (C, L) slab exceeds the VMEM budget (the v7x 64 MiB concern).
    B2, C2, L2, Cs2 = 2, 8, 512, 4
    x2 = jax.random.normal(kx2, (B2, C2, L2), dtype=jnp.float32)
    w1b = jax.random.normal(kw1, (Cs2, C2), dtype=jnp.float32) * 0.5
    b1b = jax.random.normal(kb1, (Cs2,), dtype=jnp.float32) * 0.1
    w2b = jax.random.normal(kw2, (C2, Cs2), dtype=jnp.float32) * 0.5
    b2b = jax.random.normal(kb2, (C2,), dtype=jnp.float32) * 0.1

    out2 = jax.block_until_ready(
        squeeze_and_excite(x2, w1b, b1b, w2b, b2b, vmem_budget_bytes=32 * 1024))
    ref2 = _reference(x2, w1b, b1b, w2b, b2b)
    assert out2.shape == (B2, C2, L2)
    assert jnp.allclose(out2, ref2, atol=1e-5, rtol=1e-5), "split path mismatch"

    print("KERNEL_OK")
</pallas_src>

<mosaic_0001>
module attributes {stable_mosaic.version = 11 : i64} {
  func.func @_se_fused_kernel(%arg0: i32, %arg1: memref<1x4x16xf32, #tpu.memory_space<vmem>>, %arg2: memref<4x128xf32, #tpu.memory_space<vmem>>, %arg3: memref<1x128xf32, #tpu.memory_space<vmem>>, %arg4: memref<128x4xf32, #tpu.memory_space<vmem>>, %arg5: memref<1x4xf32, #tpu.memory_space<vmem>>, %arg6: memref<1x4x16xf32, #tpu.memory_space<vmem>>) attributes {dimension_semantics = [#tpu.dimension_semantics<parallel>], iteration_bounds = array<i64: 2>, scalar_prefetch = 0 : i64, scratch_operands = 0 : i64, tpu.core_type = #tpu.core_type<tc>, window_params = [{transform_indices = @transform_0, window_bounds = array<i64: 1, 4, 16>}, {pipeline_mode = #tpu.pipeline_mode<synchronous>, transform_indices = @transform_1, window_bounds = array<i64: 4, 128>}, {pipeline_mode = #tpu.pipeline_mode<synchronous>, transform_indices = @transform_2, window_bounds = array<i64: 1, 128>}, {pipeline_mode = #tpu.pipeline_mode<synchronous>, transform_indices = @transform_3, window_bounds = array<i64: 128, 4>}, {pipeline_mode = #tpu.pipeline_mode<synchronous>, transform_indices = @transform_4, window_bounds = array<i64: 1, 4>}, {transform_indices = @transform_5, window_bounds = array<i64: 1, 4, 16>}]} {
    %c0 = arith.constant 0 : index
    %c0_0 = arith.constant 0 : index
    %c0_1 = arith.constant 0 : index
    %0 = vector.load %arg1[%c0, %c0_0, %c0_1] : memref<1x4x16xf32, #tpu.memory_space<vmem>>, vector<1x4x16xf32>
    %cst = arith.constant dense<0.000000e+00> : vector<1x4xf32>
    %1 = vector.multi_reduction <add>, %0, %cst [2] : vector<1x4x16xf32> to vector<1x4xf32>
    %cst_2 = arith.constant 6.250000e-02 : f32
    %2 = vector.broadcast %cst_2 : f32 to vector<1x4xf32>
    %3 = arith.mulf %1, %2 : vector<1x4xf32>
    %c0_3 = arith.constant 0 : index
    %c0_4 = arith.constant 0 : index
    %4 = vector.load %arg2[%c0_3, %c0_4] : memref<4x128xf32, #tpu.memory_space<vmem>>, vector<4x128xf32>
    %c0_5 = arith.constant 0 : index
    %c0_6 = arith.constant 0 : index
    %5 = vector.load %arg3[%c0_5, %c0_6] : memref<1x128xf32, #tpu.memory_space<vmem>>, vector<1x128xf32>
    %c0_7 = arith.constant 0 : index
    %c0_8 = arith.constant 0 : index
    %6 = vector.load %arg4[%c0_7, %c0_8] : memref<128x4xf32, #tpu.memory_space<vmem>>, vector<128x4xf32>
    %c0_9 = arith.constant 0 : index
    %c0_10 = arith.constant 0 : index
    %7 = vector.load %arg5[%c0_9, %c0_10] : memref<1x4xf32, #tpu.memory_space<vmem>>, vector<1x4xf32>
    %cst_11 = arith.constant dense<0.000000e+00> : vector<1x128xf32>
    %8 = tpu.matmul %3, %4, %cst_11 {dimension_numbers = #tpu.dot_dimension_numbers<[1], [0], [0], [1], [0, 0, 1, 1], [], []>} : vector<1x4xf32>, vector<4x128xf32>, vector<1x128xf32> -> vector<1x128xf32>
    %9 = arith.addf %8, %5 : vector<1x128xf32>
    %cst_12 = arith.constant 0.000000e+00 : f32
    %10 = vector.broadcast %cst_12 : f32 to vector<1x128xf32>
    %11 = arith.maximumf %10, %9 : vector<1x128xf32>
    %12 = vector.broadcast %cst_12 : f32 to vector<1x128xf32>
    %13 = arith.subf %12, %9 : vector<1x128xf32>
    %14 = arith.cmpf one, %13, %13 : vector<1x128xf32>
    %15 = vector.broadcast %cst_12 : f32 to vector<1x128xf32>
    %16 = arith.addf %15, %9 : vector<1x128xf32>
    %17 = math.absf %13 : vector<1x128xf32>
    %cst_13 = arith.constant 0.000000e+00 : f32
    %18 = vector.broadcast %cst_13 : f32 to vector<1x128xf32>
    %19 = arith.subf %18, %17 : vector<1x128xf32>
    %20 = math.exp %19 : vector<1x128xf32>
    %21 = math.log1p %20 : vector<1x128xf32>
    %22 = arith.addf %11, %21 : vector<1x128xf32>
    %23 = arith.select %14, %16, %22 : vector<1x128xi1>, vector<1x128xf32>
    %24 = math.tanh %23 : vector<1x128xf32>
    %25 = arith.mulf %9, %24 : vector<1x128xf32>
    %cst_14 = arith.constant dense<0.000000e+00> : vector<1x4xf32>
    %26 = tpu.matmul %25, %6, %cst_14 {dimension_numbers = #tpu.dot_dimension_numbers<[1], [0], [0], [1], [0, 0, 1, 1], [], []>} : vector<1x128xf32>, vector<128x4xf32>, vector<1x4xf32> -> vector<1x4xf32>
    %27 = arith.addf %26, %7 : vector<1x4xf32>
    %cst_15 = arith.constant 3.000000e+00 : f32
    %28 = vector.broadcast %cst_15 : f32 to vector<1x4xf32>
    %29 = arith.addf %27, %28 : vector<1x4xf32>
    %cst_16 = arith.constant 0.000000e+00 : f32
    %cst_17 = arith.constant 6.000000e+00 : f32
    %30 = vector.broadcast %cst_16 : f32 to vector<1x4xf32>
    %31 = arith.maximumf %30, %29 : vector<1x4xf32>
    %32 = vector.broadcast %cst_17 : f32 to vector<1x4xf32>
    %33 = arith.minimumf %32, %31 : vector<1x4xf32>
    %cst_18 = arith.constant 0.166666672 : f32
    %34 = vector.broadcast %cst_18 : f32 to vector<1x4xf32>
    %35 = arith.mulf %33, %34 : vector<1x4xf32>
    %c0_19 = arith.constant 0 : index
    %c0_20 = arith.constant 0 : index
    %c0_21 = arith.constant 0 : index
    %36 = vector.load %arg1[%c0_19, %c0_20, %c0_21] : memref<1x4x16xf32, #tpu.memory_space<vmem>>, vector<1x4x16xf32>
    %37 = vector.shape_cast %35 : vector<1x4xf32> to vector<1x4x1xf32>
    %38 = vector.broadcast %37 : vector<1x4x1xf32> to vector<1x4x16xf32>
    %39 = arith.mulf %36, %38 : vector<1x4x16xf32>
    %c0_22 = arith.constant 0 : index
    %c0_23 = arith.constant 0 : index
    %c0_24 = arith.constant 0 : index
    %40 = vector.load %arg6[%c0_22, %c0_23, %c0_24] : memref<1x4x16xf32, #tpu.memory_space<vmem>>, vector<1x4x16xf32>
    tpu.vector_store %arg6[%c0_22, %c0_23, %c0_24], %39 {strides = array<i32>} : memref<1x4x16xf32, #tpu.memory_space<vmem>>, vector<1x4x16xf32>,
    return
  }
  func.func @transform_0(%arg0: i32) -> (i32, i32, i32) {
    %c0_i32 = arith.constant 0 : i32
    %c0_i32_0 = arith.constant 0 : i32
    %c0_i32_1 = arith.constant 0 : i32
    return %arg0, %c0_i32, %c0_i32_0 : i32, i32, i32
  }
  func.func @transform_1(%arg0: i32) -> (i32, i32) {
    %c0_i32 = arith.constant 0 : i32
    %c0_i32_0 = arith.constant 0 : i32
    %c0_i32_1 = arith.constant 0 : i32
    return %c0_i32, %c0_i32_0 : i32, i32
  }
  func.func @transform_2(%arg0: i32) -> (i32, i32) {
    %c0_i32 = arith.constant 0 : i32
    %c0_i32_0 = arith.constant 0 : i32
    %c0_i32_1 = arith.constant 0 : i32
    return %c0_i32, %c0_i32_0 : i32, i32
  }
  func.func @transform_3(%arg0: i32) -> (i32, i32) {
    %c0_i32 = arith.constant 0 : i32
    %c0_i32_0 = arith.constant 0 : i32
    %c0_i32_1 = arith.constant 0 : i32
    return %c0_i32, %c0_i32_0 : i32, i32
  }
  func.func @transform_4(%arg0: i32) -> (i32, i32) {
    %c0_i32 = arith.constant 0 : i32
    %c0_i32_0 = arith.constant 0 : i32
    %c0_i32_1 = arith.constant 0 : i32
    return %c0_i32, %c0_i32_0 : i32, i32
  }
  func.func @transform_5(%arg0: i32) -> (i32, i32, i32) {
    %c0_i32 = arith.constant 0 : i32
    %c0_i32_0 = arith.constant 0 : i32
    %c0_i32_1 = arith.constant 0 : i32
    return %arg0, %c0_i32, %c0_i32_0 : i32, i32, i32
  }
}

</mosaic_0001>

<llo_original>
// kernel: tpu_custom_call.1
$region0: #{tpu_custom_call.1}
  #allocation0 [shape = 'u32[]', space=smem, size = 0x4, offset = 0x4, fixed_abs, tag = 'smem constant byte address 0x4 - core index']
  #allocation1 [shape = 'u32[144,128]{1,0:T(1,128)}', space=vmem, size = 0x12000, scoped, tag = 'internal scratch']
  %s0 = inlined_call_operand.vmem [shape: f32[2,4,16], index: 0, kind: input, shape index: {}]
  %s1 = inlined_call_operand.vmem [shape: f32[4,128], index: 1, kind: input, shape index: {}]
  %s2 = inlined_call_operand.vmem [shape: f32[1,128], index: 2, kind: input, shape index: {}]
  %s3 = inlined_call_operand.vmem [shape: f32[128,4], index: 3, kind: input, shape index: {}]
  %s4 = inlined_call_operand.vmem [shape: f32[1,4], index: 4, kind: input, shape index: {}]
  %s5 = inlined_call_operand.hbm [shape: f32[2,4,16], index: 5, kind: output, shape index: {}]
  %s6 = sld [smem:[#allocation0]]
  $region53: #{tpu_custom_call.1} parent=0
    _
  %s8 = ssub.s32 1, %s6
  %s9 = scalar_select 0, %s8, %s6
  $region1: #{tpu_custom_call.1} parent=0
    #allocation2 [shape = 'u8[4096]{0}', space=vmem, size = 0x1000, scoped, tag = 'output window, operand 0']
    #allocation3 [shape = 's32[2]{0}', space=sflag, size = 0x8, scoped, tag = 'scoped memory for tpu_custom_call.1']
    %10 = vsyncpa [#allocation3], 0
    %s11 = scalar_lea.sflag [#allocation3], 1
    %12 = vsyncpa %s11, 0
    loop: start=0, step=1, limit=4
    $region2: #{tpu_custom_call.1} parent=1 // loop_pre_header
      _
    $region3: #{tpu_custom_call.1} parent=1 // loop_header
      %s14 = sphi 0, %s18
      %p15 = scmp.ge.s32.totalorder %s14, 4
      %s24 = sphi 0, %s26
      %s27 = sphi 0, %s24
      %s28 = sphi 0, %s27
      %s44 = sphi 0, %s28
      %s48 = sphi 0, %s48
      %s50 = sphi 0, %s48
      %s51 = sphi 0, %s50
      %s65 = sphi 0, %s51
      %s69 = sphi 0, %s69
      %s71 = sphi 0, %s69
      %s72 = sphi 0, %s71
      %s86 = sphi 0, %s72
      %s90 = sphi 0, %s90
      %s92 = sphi 0, %s90
      %s93 = sphi 0, %s92
      %s107 = sphi 0, %s93
      %s111 = sphi 0, %s111
      %s113 = sphi 0, %s111
      %s114 = sphi 0, %s113
      %s128 = sphi 0, %s114
      %s134 = sphi 0, %s136
      %s137 = sphi 0, %s134
      %s138 = sphi 0, %s137
      %s154 = sphi 0, %s138
    $region4: #{tpu_custom_call.1} parent=1 // loop_header_branch
      %17 = sbr.rel (%p15) target = $region8
    $region5: #{tpu_custom_call.1} parent=1 // loop_body
      %s19 = ssub.s32 %s14, 1
      %s20 = ssub.s32 %s14, 2
      %s21 = sadd.s32 %s14, 1
      %s22 = ssub.s32 %s14, %s21
      %p23 = scmp.eq.s32.totalorder %s22, 0
      %s25 = sadd.s32 %s24, 1
      %s26 = scalar_select %p23, %s24, %s25
      %p29 = pneg %p23
      %p30 = scmp.eq.s32.totalorder %s14, 1
      %p31 = por %p29, %p30
      %p32 = scmp.ne.s32.totalorder %s24, %s27
      %p33 = scmp.eq.s32.totalorder %s14, 0
      %p34 = por %p32, %p33
      %p35 = scmp.ne.s32.totalorder %s24, %s27
      %p36 = scmp.eq.s32.totalorder %s19, 1
      %p37 = por %p35, %p36
      %p38 = scmp.ne.s32.totalorder %s27, %s28
      %p39 = scmp.eq.s32.totalorder %s19, 0
      %p40 = por %p38, %p39
      %p41 = scmp.ne.s32.totalorder %s27, %s28
      %p42 = scmp.eq.s32.totalorder %s20, 1
      %p43 = por %p41, %p42
      %p45 = scmp.ne.s32.totalorder %s28, %s44
      %p46 = scmp.eq.s32.totalorder %s20, 0
      %p47 = por %p45, %p46
      %s49 = sadd.s32 %s48, 1
      %p52 = scmp.eq.s32.totalorder %s14, 1
      %p53 = scmp.ne.s32.totalorder %s48, %s50
      %p54 = scmp.eq.s32.totalorder %s14, 0
      %p55 = por %p53, %p54
      %p56 = scmp.ne.s32.totalorder %s48, %s50
      %p57 = scmp.eq.s32.totalorder %s19, 1
      %p58 = por %p56, %p57
      %p59 = scmp.ne.s32.totalorder %s50, %s51
      %p60 = scmp.eq.s32.totalorder %s19, 0
      %p61 = por %p59, %p60
      %p62 = scmp.ne.s32.totalorder %s50, %s51
      %p63 = scmp.eq.s32.totalorder %s20, 1
      %p64 = por %p62, %p63
      %p66 = scmp.ne.s32.totalorder %s51, %s65
      %p67 = scmp.eq.s32.totalorder %s20, 0
      %p68 = por %p66, %p67
      %s70 = sadd.s32 %s69, 1
      %p73 = scmp.eq.s32.totalorder %s14, 1
      %p74 = scmp.ne.s32.totalorder %s69, %s71
      %p75 = scmp.eq.s32.totalorder %s14, 0
      %p76 = por %p74, %p75
      %p77 = scmp.ne.s32.totalorder %s69, %s71
      %p78 = scmp.eq.s32.totalorder %s19, 1
      %p79 = por %p77, %p78
      %p80 = scmp.ne.s32.totalorder %s71, %s72
      %p81 = scmp.eq.s32.totalorder %s19, 0
      %p82 = por %p80, %p81
      %p83 = scmp.ne.s32.totalorder %s71, %s72
      %p84 = scmp.eq.s32.totalorder %s20, 1
      %p85 = por %p83, %p84
      %p87 = scmp.ne.s32.totalorder %s72, %s86
      %p88 = scmp.eq.s32.totalorder %s20, 0
      %p89 = por %p87, %p88
      %s91 = sadd.s32 %s90, 1
      %p94 = scmp.eq.s32.totalorder %s14, 1
      %p95 = scmp.ne.s32.totalorder %s90, %s92
      %p96 = scmp.eq.s32.totalorder %s14, 0
      %p97 = por %p95, %p96
      %p98 = scmp.ne.s32.totalorder %s90, %s92
      %p99 = scmp.eq.s32.totalorder %s19, 1
      %p100 = por %p98, %p99
      %p101 = scmp.ne.s32.totalorder %s92, %s93
      %p102 = scmp.eq.s32.totalorder %s19, 0
      %p103 = por %p101, %p102
      %p104 = scmp.ne.s32.totalorder %s92, %s93
      %p105 = scmp.eq.s32.totalorder %s20, 1
      %p106 = por %p104, %p105
      %p108 = scmp.ne.s32.totalorder %s93, %s107
      %p109 = scmp.eq.s32.totalorder %s20, 0
      %p110 = por %p108, %p109
      %s112 = sadd.s32 %s111, 1
      %p115 = scmp.eq.s32.totalorder %s14, 1
      %p116 = scmp.ne.s32.totalorder %s111, %s113
      %p117 = scmp.eq.s32.totalorder %s14, 0
      %p118 = por %p116, %p117
      %p119 = scmp.ne.s32.totalorder %s111, %s113
      %p120 = scmp.eq.s32.totalorder %s19, 1
      %p121 = por %p119, %p120
      %p122 = scmp.ne.s32.totalorder %s113, %s114
      %p123 = scmp.eq.s32.totalorder %s19, 0
      %p124 = por %p122, %p123
      %p125 = scmp.ne.s32.totalorder %s113, %s114
      %p126 = scmp.eq.s32.totalorder %s20, 1
      %p127 = por %p125, %p126
      %p129 = scmp.ne.s32.totalorder %s114, %s128
      %p130 = scmp.eq.s32.totalorder %s20, 0
      %p131 = por %p129, %p130
      %s132 = ssub.s32 %s14, %s21
      %p133 = scmp.eq.s32.totalorder %s132, 0
      %s135 = sadd.s32 %s134, 1
      %s136 = scalar_select %p133, %s134, %s135
      %p139 = pneg %p133
      %p140 = scmp.eq.s32.totalorder %s14, 1
      %p141 = por %p139, %p140
      %p142 = scmp.ne.s32.totalorder %s134, %s137
      %p143 = scmp.eq.s32.totalorder %s14, 0
      %p144 = por %p142, %p143
      %p145 = scmp.ne.s32.totalorder %s134, %s137
      %p146 = scmp.eq.s32.totalorder %s19, 1
      %p147 = por %p145, %p146
      %p148 = scmp.ne.s32.totalorder %s137, %s138
      %p149 = scmp.eq.s32.totalorder %s19, 0
      %p150 = por %p148, %p149
      %p151 = scmp.ne.s32.totalorder %s137, %s138
      %p152 = scmp.eq.s32.totalorder %s20, 1
      %p153 = por %p151, %p152
      %p155 = scmp.ne.s32.totalorder %s138, %s154
      %p156 = scmp.eq.s32.totalorder %s20, 0
      %p157 = por %p155, %p156
      %p158 = scmp.le.s32.totalorder 1, %s14
      %p159 = scmp.lt.s32.totalorder %s14, 3
      %p160 = pnand %p158, %p159
      %p161 = pneg %p160
      // Predicated region
      $region9: #{tpu_custom_call.1} parent=5 // pred_check
        _
      $region10: #{tpu_custom_call.1} parent=5 // pred_check_branch
        %163 = sbr.rel (%p160) target = $region12
      $region11: #{tpu_custom_call.1} parent=5 // pred_region
        %s164 = ssub.s32 %s14, 1
        // Predicated region
        $region13: #{tpu_custom_call.1} parent=11 // pred_check
          %p165 = pneg %p61
        $region14: #{tpu_custom_call.1} parent=11 // pred_check_branch
          %167 = sbr.rel (%p165) target = $region16
        $region15: #{tpu_custom_call.1} parent=11 // pred_region
          _
        $region16: #{tpu_custom_call.1} parent=11 // pred_fallthru
          _
        // Predicated region
        $region17: #{tpu_custom_call.1} parent=11 // pred_check
          %p168 = pneg %p82
        $region18: #{tpu_custom_call.1} parent=11 // pred_check_branch
          %170 = sbr.rel (%p168) target = $region20
        $region19: #{tpu_custom_call.1} parent=11 // pred_region
          _
        $region20: #{tpu_custom_call.1} parent=11 // pred_fallthru
          _
        // Predicated region
        $region21: #{tpu_custom_call.1} parent=11 // pred_check
          %p171 = pneg %p103
        $region22: #{tpu_custom_call.1} parent=11 // pred_check_branch
          %173 = sbr.rel (%p171) target = $region24
        $region23: #{tpu_custom_call.1} parent=11 // pred_region
          _
        $region24: #{tpu_custom_call.1} parent=11 // pred_fallthru
          _
        // Predicated region
        $region25: #{tpu_custom_call.1} parent=11 // pred_check
          %p174 = pneg %p124
        $region26: #{tpu_custom_call.1} parent=11 // pred_check_branch
          %176 = sbr.rel (%p174) target = $region28
        $region27: #{tpu_custom_call.1} parent=11 // pred_region
          _
        $region28: #{tpu_custom_call.1} parent=11 // pred_fallthru
          _
      $region12: #{tpu_custom_call.1} parent=5 // pred_fallthru
        _
      %p177 = scmp.lt.s32.totalorder %s14, 2
      // Predicated region
      $region29: #{tpu_custom_call.1} parent=5 // pred_check
        %p178 = pneg %p177
      $region30: #{tpu_custom_call.1} parent=5 // pred_check_branch
        %180 = sbr.rel (%p178) target = $region32
      $region31: #{tpu_custom_call.1} parent=5 // pred_region
        // Predicated region
        $region33: #{tpu_custom_call.1} parent=31 // pred_check
          %p181 = pneg %p34
        $region34: #{tpu_custom_call.1} parent=31 // pred_check_branch
          %183 = sbr.rel (%p181) target = $region36
        $region35: #{tpu_custom_call.1} parent=31 // pred_region
          %p184 = scmp.lt.s32.totalorder %s14, 1
          %s185 = scalar_select %p184, %s14, 1
          %s186 = smul.addr %s185, 4
          %s187 = scalar_lea.vmem %s0, %s186
        $region36: #{tpu_custom_call.1} parent=31 // pred_fallthru
          _
      $region32: #{tpu_custom_call.1} parent=5 // pred_fallthru
        _
      %p188 = scmp.le.s32.totalorder 1, %s14
      %p189 = scmp.lt.s32.totalorder %s14, 3
      %p190 = pnand %p188, %p189
      %p191 = pneg %p190
      // Predicated region
      $region37: #{tpu_custom_call.1} parent=5 // pred_check
        _
      $region38: #{tpu_custom_call.1} parent=5 // pred_check_branch
        %193 = sbr.rel (%p190) target = $region40
      $region39: #{tpu_custom_call.1} parent=5 // pred_region
        %s194 = ssub.s32 %s14, 1
        %p195 = scmp.lt.s32.totalorder %s19, 1
        %s196 = scalar_select %p195, %s19, 1
        %s197 = smul.addr %s196, 4
        %s198 = scalar_lea.vmem %s0, %s197
        %p199 = pneg %p40
        %p200 = pneg %p37
        %p201 = pneg %p61
        %p202 = pneg %p58
        %p203 = pneg %p82
        %p204 = pneg %p79
        %p205 = pneg %p103
        %p206 = pneg %p100
        %p207 = pneg %p124
        %p208 = pneg %p121
        %p209 = pneg %p150
        %p210 = pneg %p147
        %s211 = sand.u32 %s137, 1
        %s212 = scalar_lea.sflag [#allocation3], %s211
        %s213 = sand.u32 %s137, 1
        %s214 = smul.addr %s213, 4
        %s215 = scalar_lea.vmem [#allocation2], %s214
        %p216 = scmp.lt.s32.totalorder %s19, 1
        %s217 = scalar_select %p216, %s19, 1
        %s218 = smul.addr %s217, 4
        %s219 = scalar_lea.vmem %s0, %s218
        %v220 = vld [vmem:[%s219] sm:$0xf]
        %vm221 = vcmask 125952
        %v222 = vsel %vm221, %v220, 0.0
        %223 = vadd.xlane.f32.xlu0 %v222
        %v224 = vpop.xlane.xlu0 %223
        %v225 = vmul.f32 %v224, 0.0625
        %v226 = vld [vmem:[%s1] sm:$0xf]
        %v227 = vld [vmem:[%s2] sm:$0x1]
        %v228 = vld [vmem:[%s3] sm:$0xff]
        %v229 = vld [vmem:[%s3 + $0x8] sm:$0xff]
        %v230 = vld [vmem:[%s3 + $0x10] sm:$0xff]
        %v231 = vld [vmem:[%s3 + $0x18] sm:$0xff]
        %v232 = vld [vmem:[%s3 + $0x20] sm:$0xff]
        %v233 = vld [vmem:[%s3 + $0x28] sm:$0xff]
        %v234 = vld [vmem:[%s3 + $0x30] sm:$0xff]
        %v235 = vld [vmem:[%s3 + $0x38] sm:$0xff]
        %v236 = vld [vmem:[%s3 + $0x40] sm:$0xff]
        %v237 = vld [vmem:[%s3 + $0x48] sm:$0xff]
        %v238 = vld [vmem:[%s3 + $0x50] sm:$0xff]
        %v239 = vld [vmem:[%s3 + $0x58] sm:$0xff]
        %v240 = vld [vmem:[%s3 + $0x60] sm:$0xff]
        %v241 = vld [vmem:[%s3 + $0x68] sm:$0xff]
        %v242 = vld [vmem:[%s3 + $0x70] sm:$0xff]
        %v243 = vld [vmem:[%s3 + $0x78] sm:$0xff]
        %v244 = vld [vmem:[%s4] sm:$0x1]
        %v246 = vlaneseq
        %v247 = vand.u32 %v246, 127
        %v248 = vlaneseq
        %v249 = vshrl.u32 %v248, 7
        %v250 = vsub.s32 %v247, %v249
        %v251 = vrot.slane %v225, %v250
        %vm252 = vcmask 31744
        %v253 = vsel %vm252, %v251, 0
        %vm255 = vcmask 1043456
        %v257 = vsel %vm255, %v226, 0
        %259 = vmatprep.subr.mxu0 0.0
        %260 = vmatpush1.msra.mxu0 0.0
        %261 = vmatprep.subr.mxu0 0.0
        %262 = vmatpush1.msra.mxu0 0.0
        %263 = vmatprep.subr.mxu0 0.0
        %264 = vmatpush1.msra.mxu0 0.0
        %265 = vmatprep.subr.mxu0 0.0
        %266 = vmatpush1.msra.mxu0 0.0
        %267 = vmatprep.subr.mxu0 0.0
        %268 = vmatpush1.msra.mxu0 0.0
        %269 = vmatprep.subr.mxu0 0.0
        %270 = vmatpush1.msra.mxu0 0.0
        %271 = vmatprep.subr.mxu0 0.0
        %272 = vmatpush1.msra.mxu0 0.0
        %273 = vmatprep.subr.mxu0 0.0
        %274 = vmatpush1.msra.mxu0 0.0
        %275 = vmatprep.subr.mxu0 0.0
        %276 = vmatpush1.msra.mxu0 0.0
        %277 = vmatprep.subr.mxu0 0.0
        %278 = vmatpush1.msra.mxu0 0.0
        %279 = vmatprep.subr.mxu0 0.0
        %280 = vmatpush1.msra.mxu0 0.0
        %281 = vmatprep.subr.mxu0 0.0
        %282 = vmatpush1.msra.mxu0 0.0
        %283 = vmatprep.subr.mxu0 0.0
        %284 = vmatpush1.msra.mxu0 0.0
        %285 = vmatprep.subr.mxu0 0.0
        %286 = vmatpush1.msra.mxu0 0.0
        %287 = vmatprep.subr.mxu0 0.0
        %288 = vmatpush1.msra.mxu0 0.0
        %289 = vmatprep.subr.mxu0 0.0
        %290 = vmatpush1.msra.mxu0 %v257
        %291 = vmatprep.subr.mxu0 0.0
        %292 = vmatpush2.msra.mxu0 0.0
        %293 = vmatprep.subr.mxu0 0.0
        %294 = vmatpush2.msra.mxu0 0.0
        %295 = vmatprep.subr.mxu0 0.0
        %296 = vmatpush2.msra.mxu0 0.0
        %297 = vmatprep.subr.mxu0 0.0
        %298 = vmatpush2.msra.mxu0 0.0
        %299 = vmatprep.subr.mxu0 0.0
        %300 = vmatpush2.msra.mxu0 0.0
        %301 = vmatprep.subr.mxu0 0.0
        %302 = vmatpush2.msra.mxu0 0.0
        %303 = vmatprep.subr.mxu0 0.0
        %304 = vmatpush2.msra.mxu0 0.0
        %305 = vmatprep.subr.mxu0 0.0
        %306 = vmatpush2.msra.mxu0 0.0
        %307 = vmatprep.subr.mxu0 0.0
        %308 = vmatpush2.msra.mxu0 0.0
        %309 = vmatprep.subr.mxu0 0.0
        %310 = vmatpush2.msra.mxu0 0.0
        %311 = vmatprep.subr.mxu0 0.0
        %312 = vmatpush2.msra.mxu0 0.0
        %313 = vmatprep.subr.mxu0 0.0
        %314 = vmatpush2.msra.mxu0 0.0
        %315 = vmatprep.subr.mxu0 0.0
        %316 = vmatpush2.msra.mxu0 0.0
        %317 = vmatprep.subr.mxu0 0.0
        %318 = vmatpush2.msra.mxu0 0.0
        %319 = vmatprep.subr.mxu0 0.0
        %320 = vmatpush2.msra.mxu0 0.0
        %321 = vmatprep.subr.mxu0 0.0
        %322 = vmatpush2.msra.mxu0 0.0
        %323 = vmatprep.mubr.f32.mxu0 0.0
        %324 = vmatmul.mubr.f32.gmra.mxu0 %v253
        %v325 = vpop.f32.mrf.mxu0
        %v326 = vadd.f32 %v227, %v325
        %v327 = vpop.f32.mrf.mxu0
        %328 = vdwg.mxu0
        %v329 = vmax.f32 %v326, 0.0
        %v330 = vsub.f32 0.0, %v326
        %vm331 = vcmp.ne.f32.partialorder %v330, %v330
        %v332 = vadd.f32 %v326, 0.0
        %v333 = vand.u32 2147483647, %v330
        %v334 = vsub.f32 0.0, %v333
        %v335 = vmul.f32 %v334, 1.442695
        %v336 = vpow.pop %v335
        %v337 = vadd.f32 %v336, 1.0
        %v338 = vlog2.pop %v337
        %v339 = vmul.f32 %v338, 0.6931472
        %v340 = vmul.f32 -0.5, %v336
        %v341 = vadd.f32 %v340, 1.0
        %v342 = vmul.f32 %v341, %v336
        %v343 = vand.u32 2147483647, %v336
        %vm344 = vcmp.lt.f32.partialorder %v343, 0.0004427343
        %v345 = vsel %vm344, %v342, %v339
        %v346 = vadd.f32 %v329, %v345
        %v347 = vsel %vm331, %v332, %v346
        %v348 = vtanh.pop %v347
        %v349 = vmul.f32 %v326, %v348
        %350 = vmatprep.subr.mxu0 0.0
        %351 = vmatpush1.msra.mxu0 %v243
        %352 = vmatprep.subr.mxu0 0.0
        %353 = vmatpush1.msra.mxu0 %v242
        %354 = vmatprep.subr.mxu0 0.0
        %355 = vmatpush1.msra.mxu0 %v241
        %356 = vmatprep.subr.mxu0 0.0
        %357 = vmatpush1.msra.mxu0 %v240
        %358 = vmatprep.subr.mxu0 0.0
        %359 = vmatpush1.msra.mxu0 %v239
        %360 = vmatprep.subr.mxu0 0.0
        %361 = vmatpush1.msra.mxu0 %v238
        %362 = vmatprep.subr.mxu0 0.0
        %363 = vmatpush1.msra.mxu0 %v237
        %364 = vmatprep.subr.mxu0 0.0
        %365 = vmatpush1.msra.mxu0 %v236
        %366 = vmatprep.subr.mxu0 0.0
        %367 = vmatpush1.msra.mxu0 %v235
        %368 = vmatprep.subr.mxu0 0.0
        %369 = vmatpush1.msra.mxu0 %v234
        %370 = vmatprep.subr.mxu0 0.0
        %371 = vmatpush1.msra.mxu0 %v233
        %372 = vmatprep.subr.mxu0 0.0
        %373 = vmatpush1.msra.mxu0 %v232
        %374 = vmatprep.subr.mxu0 0.0
        %375 = vmatpush1.msra.mxu0 %v231
        %376 = vmatprep.subr.mxu0 0.0
        %377 = vmatpush1.msra.mxu0 %v230
        %378 = vmatprep.subr.mxu0 0.0
        %379 = vmatpush1.msra.mxu0 %v229
        %380 = vmatprep.subr.mxu0 0.0
        %381 = vmatpush1.msra.mxu0 %v228
        %382 = vmatprep.subr.mxu0 0.0
        %383 = vmatpush2.msra.mxu0 0.0
        %384 = vmatprep.subr.mxu0 0.0
        %385 = vmatpush2.msra.mxu0 0.0
        %386 = vmatprep.subr.mxu0 0.0
        %387 = vmatpush2.msra.mxu0 0.0
        %388 = vmatprep.subr.mxu0 0.0
        %389 = vmatpush2.msra.mxu0 0.0
        %390 = vmatprep.subr.mxu0 0.0
        %391 = vmatpush2.msra.mxu0 0.0
        %392 = vmatprep.subr.mxu0 0.0
        %393 = vmatpush2.msra.mxu0 0.0
        %394 = vmatprep.subr.mxu0 0.0
        %395 = vmatpush2.msra.mxu0 0.0
        %396 = vmatprep.subr.mxu0 0.0
        %397 = vmatpush2.msra.mxu0 0.0
        %398 = vmatprep.subr.mxu0 0.0
        %399 = vmatpush2.msra.mxu0 0.0
        %400 = vmatprep.subr.mxu0 0.0
        %401 = vmatpush2.msra.mxu0 0.0
        %402 = vmatprep.subr.mxu0 0.0
        %403 = vmatpush2.msra.mxu0 0.0
        %404 = vmatprep.subr.mxu0 0.0
        %405 = vmatpush2.msra.mxu0 0.0
        %406 = vmatprep.subr.mxu0 0.0
        %407 = vmatpush2.msra.mxu0 0.0
        %408 = vmatprep.subr.mxu0 0.0
        %409 = vmatpush2.msra.mxu0 0.0
        %410 = vmatprep.subr.mxu0 0.0
        %411 = vmatpush2.msra.mxu0 0.0
        %412 = vmatprep.subr.mxu0 0.0
        %413 = vmatpush2.msra.mxu0 0.0
        %414 = vmatprep.mubr.f32.mxu0 0.0
        %415 = vmatmul.mubr.f32.gmra.mxu0 %v349
        %v416 = vpop.f32.mrf.mxu0
        %v417 = vadd.f32 %v244, %v416
        %v418 = vpop.f32.mrf.mxu0
        %419 = vdwg.mxu0
        %v420 = vadd.f32 %v417, 3.0
        %v421 = vmax.f32 %v420, 0.0
        %v422 = vmin.f32 %v421, 6.0
        %v423 = vmul.f32 %v422, 0.16666667
        %v424 = vlaneseq
        %v425 = vshrl.u32 %v424, 7
        %v426 = vsub.s32 0, %v425
        %v427 = vrot.slane %v423, %v426
        %429 = vbcast.lane.b32.xlu0 %v427, 256
        %v430 = vpop.permute.xlu0 %429
        %v431 = vmul.f32 %v220, %v430
        %432 = vst.msk [vmem:[%s215] sm:$0xf] %vm221, %v431
        %s433 = sand.u32 %s137, 1
        %s434 = scalar_lea.sflag [#allocation3], %s433
        %s435 = sand.u32 %s137, 1
        %s436 = smul.addr %s435, 4
        %s437 = scalar_lea.vmem [#allocation2], %s436
        // Predicated region
        $region41: #{tpu_custom_call.1} parent=39 // pred_check
          %p438 = pneg %p147
        $region42: #{tpu_custom_call.1} parent=39 // pred_check_branch
          %440 = sbr.rel (%p438) target = $region44
        $region43: #{tpu_custom_call.1} parent=39 // pred_region
          %s442 = ssub.s32 64, 64
          %443 = vsyncadd %s434, %s442
          %s444 = smul.addr %s19, 64
          %s445 = scalar_lea.hbm %s5, %s444
          %s447 = sshll.u32 %s437, 4
          %s448 = int_to_ptr.vmem [resolvable:$true] %s447
          %450 = dma.vmem_to_hbm [thread:$0]  %s448, 64, %s445, %s434
        $region44: #{tpu_custom_call.1} parent=39 // pred_fallthru
          _
      $region40: #{tpu_custom_call.1} parent=5 // pred_fallthru
        _
      %p451 = scmp.le.s32.totalorder 2, %s14
      // Predicated region
      $region45: #{tpu_custom_call.1} parent=5 // pred_check
        %p452 = pneg %p451
      $region46: #{tpu_custom_call.1} parent=5 // pred_check_branch
        %454 = sbr.rel (%p452) target = $region48
      $region47: #{tpu_custom_call.1} parent=5 // pred_region
        %s455 = ssub.s32 %s14, 2
        // Predicated region
        $region49: #{tpu_custom_call.1} parent=47 // pred_check
          %p456 = pneg %p153
        $region50: #{tpu_custom_call.1} parent=47 // pred_check_branch
          %458 = sbr.rel (%p456) target = $region52
        $region51: #{tpu_custom_call.1} parent=47 // pred_region
          %s459 = sand.u32 %s138, 1
          %s460 = scalar_lea.sflag [#allocation3], %s459
          %s461 = sand.u32 %s138, 1
          %s462 = smul.addr %s461, 4
          %s463 = scalar_lea.vmem [#allocation2], %s462
          %464 = dma.done %s460, 64
        $region52: #{tpu_custom_call.1} parent=47 // pred_fallthru
          _
      $region48: #{tpu_custom_call.1} parent=5 // pred_fallthru
        _
    $region6: #{tpu_custom_call.1} parent=1 // loop_footer
      %s18 = sadd.s32 1, %s14
    $region7: #{tpu_custom_call.1} parent=1 // loop_footer_branch
      %13 = sbr.rel target = $region3
    $region8: #{tpu_custom_call.1} parent=1 // loop_exit
      _
    %465 = vsyncpa [#allocation3], 1
    %s466 = scalar_lea.sflag [#allocation3], 1
    %467 = vsyncpa %s466, 1

</llo_original>
